<compile_context>
chip_gen: v7x
topology: tpu7x:2x2x1
jax: 0.10.0
libtpu: 0.0.40
codegen_flags: <defaults>
</compile_context>

<pallas_src>
import functools

import jax
import jax.numpy as jnp
from jax.experimental import pallas as pl
from jax.experimental.pallas import tpu as pltpu


def _round_up(x, m):
    return (x + m - 1) // m * m


# ----------------------------------------------------------------------------------
# Kernel body
# ----------------------------------------------------------------------------------
def predictor_kernel(belief_ref, action_ref,
                     w1s_ref, wA_ref, b1_ref,
                     w2h_ref, b2_ref,
                     w3h_ref, b3_ref,
                     out_ref, *, hidden_p):
    cdt = w1s_ref.dtype                       # MXU input dtype (bf16 by default)
    belief = belief_ref[...].astype(cdt)
    action = action_ref[...].astype(cdt)

    # One fused projection of `action` through all three action-weight blocks.
    # hidden_p is a multiple of 128, so the first two slice boundaries are lane-aligned.
    a_proj = jnp.dot(action, wA_ref[...], preferred_element_type=jnp.float32)
    a1 = a_proj[:, :hidden_p]
    a2 = a_proj[:, hidden_p:2 * hidden_p]
    a3 = a_proj[:, 2 * hidden_p:]

    # fc1(cat(belief, action)) -> relu      (biases stay f32; accumulation is f32)
    h1 = jnp.dot(belief, w1s_ref[...], preferred_element_type=jnp.float32) + a1 + b1_ref[...]
    h1 = jnp.maximum(h1, 0.0)

    # fc2(cat(h1, action)) -> relu
    h2 = jnp.dot(h1.astype(cdt), w2h_ref[...], preferred_element_type=jnp.float32) + a2 + b2_ref[...]
    h2 = jnp.maximum(h2, 0.0)

    # fc3(cat(h2, action))   (no activation)
    mean = jnp.dot(h2.astype(cdt), w3h_ref[...], preferred_element_type=jnp.float32) + a3 + b3_ref[...]
    out_ref[...] = mean.astype(out_ref.dtype)


# ----------------------------------------------------------------------------------
# One-time parameter preparation (OUT of the hot path)
# ----------------------------------------------------------------------------------
def prepare_params(params, *, compute_dtype=jnp.bfloat16):
    """Pad hidden dims to 128 lanes, fuse the three action blocks, cast to bf16. Run once."""
    (w1s, w1a, b1), (w2h, w2a, b2), (w3h, w3a, b3) = params
    state_size, hidden = w1s.shape
    action_size = w1a.shape[0]
    emb = w3h.shape[-1]
    hidden_p = _round_up(hidden, 128)

    def pad_n(w, n):         # zero-pad output (lane) axis
        return jnp.pad(w, ((0, 0), (0, n - w.shape[1])))

    def pad_kn(w, k, n):     # zero-pad input and output axes
        return jnp.pad(w, ((0, k - w.shape[0]), (0, n - w.shape[1])))

    # Fused action weight: (action_size, 2*hidden_p + emb). emb stays unpadded so the
    # kernel writes the output at its true width (avoids 4x HBM write amplification).
    wA = jnp.concatenate([pad_n(w1a, hidden_p), pad_n(w2a, hidden_p), w3a], axis=1)

    return dict(
        w1s=pad_n(w1s, hidden_p).astype(compute_dtype),
        wA=wA.astype(compute_dtype),
        b1=pad_n(b1, hidden_p).astype(jnp.float32),
        w2h=pad_kn(w2h, hidden_p, hidden_p).astype(compute_dtype),
        b2=pad_n(b2, hidden_p).astype(jnp.float32),
        w3h=pad_kn(w3h, hidden_p, emb).astype(compute_dtype),
        b3=b3.astype(jnp.float32),
        state_size=state_size, action_size=action_size,
        hidden_p=hidden_p, emb=emb,
    )


# ----------------------------------------------------------------------------------
# Forward pass
# ----------------------------------------------------------------------------------
def one_step_predictor(belief, action, prepared, *, batch_tile=None):
    """belief: (B, state_size), action: (B, action_size) -> (B, embedding_size)."""
    B, state_size = belief.shape
    action_size = action.shape[-1]
    assert state_size == prepared["state_size"] and action_size == prepared["action_size"]
    hidden_p, emb = prepared["hidden_p"], prepared["emb"]
    w1s, wA, b1 = prepared["w1s"], prepared["wA"], prepared["b1"]
    w2h, b2 = prepared["w2h"], prepared["b2"]
    w3h, b3 = prepared["w3h"], prepared["b3"]

    # Batch tiling: one program for small B; otherwise >= 2 programs (v7x has 2 TCs)
    # with tiles up to 512 rows (per-grid-step overhead dominates small tiles).
    if batch_tile is None:
        batch_tile = B if B <= 128 else min(512, pl.cdiv(B, 2))
    batch_tile = max(8, _round_up(batch_tile, 8))
    B_pad = _round_up(B, batch_tile)
    if B_pad != B:
        belief = jnp.pad(belief, ((0, B_pad - B), (0, 0)))
        action = jnp.pad(action, ((0, B_pad - B), (0, 0)))
    grid = (B_pad // batch_tile,)

    # VMEM budget from actual buffer sizes (raises v5e's 16 MiB default scoped limit,
    # capped at v7x's 64 MiB physical VMEM). Generous 3x headroom.
    nbytes = lambda a: a.size * a.dtype.itemsize
    weight_bytes = sum(nbytes(a) for a in (w1s, wA, b1, w2h, b2, w3h, b3))
    io_bytes = 2 * batch_tile * (state_size + action_size + emb) * belief.dtype.itemsize
    scratch_bytes = 4 * batch_tile * (4 * hidden_p + 2 * emb)    # a_proj + h1 + h2 in f32
    vmem_limit = int(min(max(3 * (2 * weight_bytes + io_bytes + scratch_bytes), 32 << 20),
                         64 << 20))

    def batch_spec(feat):
        return pl.BlockSpec((batch_tile, feat), lambda i: (i, 0))

    def run(single_buffer_weights):
        def full_spec(shape):
            imap = lambda i: (0,) * len(shape)
            if single_buffer_weights:
                # Grid-invariant: fetched once; one VMEM buffer halves resident footprint
                # (matters for wide hidden sizes on v7x's 64 MiB VMEM).
                return pl.BlockSpec(shape, imap, pipeline_mode=pl.Buffered(1))
            return pl.BlockSpec(shape, imap)

        in_specs = [
            batch_spec(state_size),            # belief
            batch_spec(action_size),           # action
            full_spec(w1s.shape), full_spec(wA.shape), full_spec(b1.shape),
            full_spec(w2h.shape), full_spec(b2.shape),
            full_spec(w3h.shape), full_spec(b3.shape),
        ]
        # Output block uses the full-array-dim exemption on the (unpadded) emb axis.
        out_spec = pl.BlockSpec((batch_tile, emb), lambda i: (i, 0))

        return pl.pallas_call(
            functools.partial(predictor_kernel, hidden_p=hidden_p),
            out_shape=jax.ShapeDtypeStruct((B_pad, emb), belief.dtype),
            grid=grid,
            in_specs=in_specs,
            out_specs=out_spec,
            compiler_params=pltpu.CompilerParams(
                dimension_semantics=("parallel",),   # batch tiles shard across v7x TCs
                vmem_limit_bytes=vmem_limit),
        )(belief, action, w1s, wA, b1, w2h, b2, w3h, b3)

    try:
        out = run(True)
    except Exception:
        # pl.Buffered(1) single-buffering unsupported on this jax/libtpu: default pipeline.
        out = run(False)

    # TODO(synk): for hidden_p large enough that resident weights bust v7x VMEM even in
    # bf16, add a feature-axis grid dimension (N tiles of 256-512) instead of full residency.
    return out if B_pad == B else out[:B]


# ----------------------------------------------------------------------------------
# Reference / init
# ----------------------------------------------------------------------------------
def init_params(key, state_size, action_size, embedding_size, model_width_factor=1):
    """Deterministic synthetic init mirroring nn.Linear shapes (stored as (in, out))."""
    hidden_size = embedding_size * model_width_factor
    ks = jax.random.split(key, 6)

    def linear(kw, kb, fan_in, fan_out):
        bound = 1.0 / jnp.sqrt(fan_in)
        w = jax.random.uniform(kw, (fan_in, fan_out), jnp.float32, -bound, bound)
        b = jax.random.uniform(kb, (1, fan_out), jnp.float32, -bound, bound)
        return w, b

    w1, b1 = linear(ks[0], ks[1], state_size + action_size, hidden_size)
    w1s, w1a = w1[:state_size], w1[state_size:]
    w2, b2 = linear(ks[2], ks[3], hidden_size + action_size, hidden_size)
    w2h, w2a = w2[:hidden_size], w2[hidden_size:]
    w3, b3 = linear(ks[4], ks[5], hidden_size + action_size, embedding_size)
    w3h, w3a = w3[:hidden_size], w3[hidden_size:]
    return (w1s, w1a, b1), (w2h, w2a, b2), (w3h, w3a, b3)


def reference(belief, action, params):
    (w1s, w1a, b1), (w2h, w2a, b2), (w3h, w3a, b3) = params
    x1 = jnp.concatenate([belief, action], axis=-1)
    h1 = jax.nn.relu(x1 @ jnp.concatenate([w1s, w1a], axis=0) + b1)
    x2 = jnp.concatenate([h1, action], axis=-1)
    h2 = jax.nn.relu(x2 @ jnp.concatenate([w2h, w2a], axis=0) + b2)
    x3 = jnp.concatenate([h2, action], axis=-1)
    return x3 @ jnp.concatenate([w3h, w3a], axis=0) + b3


if __name__ == "__main__":
    batch = 16
    state_size = 32
    action_size = 8
    embedding_size = 32
    model_width_factor = 1

    key = jax.random.PRNGKey(0)
    k_b, k_a, k_p = jax.random.split(key, 3)
    belief = jax.random.normal(k_b, (batch, state_size), jnp.float32)
    action = jax.random.normal(k_a, (batch, action_size), jnp.float32)
    params = init_params(k_p, state_size, action_size, embedding_size, model_width_factor)

    # One-time prep (pad / fuse / bf16-cast) — outside the per-call hot path.
    prepared = jax.block_until_ready(prepare_params(params, compute_dtype=jnp.bfloat16))

    out = one_step_predictor(belief, action, prepared)
    out = jax.block_until_ready(out)

    ref = reference(belief, action, params)
    assert out.shape == (batch, embedding_size)
    # bf16 MXU inputs with f32 accumulation: loosened tolerance vs the f32 reference.
    assert jnp.allclose(out, ref, atol=5e-2, rtol=5e-2), "mismatch vs reference"
    print("KERNEL_OK")
</pallas_src>

<mosaic_0001>
module attributes {stable_mosaic.version = 11 : i64} {
  func.func @predictor_kernel(%arg0: i32, %arg1: memref<16x32xf32, #tpu.memory_space<vmem>>, %arg2: memref<16x8xf32, #tpu.memory_space<vmem>>, %arg3: memref<32x128xbf16, #tpu.memory_space<vmem>>, %arg4: memref<8x288xbf16, #tpu.memory_space<vmem>>, %arg5: memref<1x128xf32, #tpu.memory_space<vmem>>, %arg6: memref<128x128xbf16, #tpu.memory_space<vmem>>, %arg7: memref<1x128xf32, #tpu.memory_space<vmem>>, %arg8: memref<128x32xbf16, #tpu.memory_space<vmem>>, %arg9: memref<1x32xf32, #tpu.memory_space<vmem>>, %arg10: memref<16x32xf32, #tpu.memory_space<vmem>>) attributes {dimension_semantics = [#tpu.dimension_semantics<parallel>], iteration_bounds = array<i64: 1>, scalar_prefetch = 0 : i64, scratch_operands = 0 : i64, tpu.core_type = #tpu.core_type<tc>, window_params = [{transform_indices = @transform_0, window_bounds = array<i64: 16, 32>}, {transform_indices = @transform_1, window_bounds = array<i64: 16, 8>}, {pipeline_mode = #tpu.pipeline_mode<synchronous>, transform_indices = @transform_2, window_bounds = array<i64: 32, 128>}, {pipeline_mode = #tpu.pipeline_mode<synchronous>, transform_indices = @transform_3, window_bounds = array<i64: 8, 288>}, {pipeline_mode = #tpu.pipeline_mode<synchronous>, transform_indices = @transform_4, window_bounds = array<i64: 1, 128>}, {pipeline_mode = #tpu.pipeline_mode<synchronous>, transform_indices = @transform_5, window_bounds = array<i64: 128, 128>}, {pipeline_mode = #tpu.pipeline_mode<synchronous>, transform_indices = @transform_6, window_bounds = array<i64: 1, 128>}, {pipeline_mode = #tpu.pipeline_mode<synchronous>, transform_indices = @transform_7, window_bounds = array<i64: 128, 32>}, {pipeline_mode = #tpu.pipeline_mode<synchronous>, transform_indices = @transform_8, window_bounds = array<i64: 1, 32>}, {transform_indices = @transform_9, window_bounds = array<i64: 16, 32>}]} {
    %c0 = arith.constant 0 : index
    %c0_0 = arith.constant 0 : index
    %0 = vector.load %arg1[%c0, %c0_0] : memref<16x32xf32, #tpu.memory_space<vmem>>, vector<16x32xf32>
    %1 = arith.truncf %0 : vector<16x32xf32> to vector<16x32xbf16>
    %c0_1 = arith.constant 0 : index
    %c0_2 = arith.constant 0 : index
    %2 = vector.load %arg2[%c0_1, %c0_2] : memref<16x8xf32, #tpu.memory_space<vmem>>, vector<16x8xf32>
    %3 = arith.truncf %2 : vector<16x8xf32> to vector<16x8xbf16>
    %c0_3 = arith.constant 0 : index
    %c0_4 = arith.constant 0 : index
    %4 = vector.load %arg4[%c0_3, %c0_4] : memref<8x288xbf16, #tpu.memory_space<vmem>>, vector<8x288xbf16>
    %cst = arith.constant dense<0.000000e+00> : vector<16x288xf32>
    %5 = tpu.matmul %3, %4, %cst {dimension_numbers = #tpu.dot_dimension_numbers<[1], [0], [0], [1], [0, 0, 1, 1], [], []>} : vector<16x8xbf16>, vector<8x288xbf16>, vector<16x288xf32> -> vector<16x288xf32>
    %6 = vector.extract_strided_slice %5 {offsets = [0, 0], sizes = [16, 128], strides = [1, 1]} : vector<16x288xf32> to vector<16x128xf32>
    %7 = vector.extract_strided_slice %5 {offsets = [0, 128], sizes = [16, 128], strides = [1, 1]} : vector<16x288xf32> to vector<16x128xf32>
    %8 = vector.extract_strided_slice %5 {offsets = [0, 256], sizes = [16, 32], strides = [1, 1]} : vector<16x288xf32> to vector<16x32xf32>
    %c0_5 = arith.constant 0 : index
    %c0_6 = arith.constant 0 : index
    %9 = vector.load %arg3[%c0_5, %c0_6] : memref<32x128xbf16, #tpu.memory_space<vmem>>, vector<32x128xbf16>
    %cst_7 = arith.constant dense<0.000000e+00> : vector<16x128xf32>
    %10 = tpu.matmul %1, %9, %cst_7 {dimension_numbers = #tpu.dot_dimension_numbers<[1], [0], [0], [1], [0, 0, 1, 1], [], []>} : vector<16x32xbf16>, vector<32x128xbf16>, vector<16x128xf32> -> vector<16x128xf32>
    %11 = arith.addf %10, %6 : vector<16x128xf32>
    %c0_8 = arith.constant 0 : index
    %c0_9 = arith.constant 0 : index
    %12 = vector.load %arg5[%c0_8, %c0_9] : memref<1x128xf32, #tpu.memory_space<vmem>>, vector<1x128xf32>
    %13 = vector.broadcast %12 : vector<1x128xf32> to vector<16x128xf32>
    %14 = arith.addf %11, %13 : vector<16x128xf32>
    %cst_10 = arith.constant 0.000000e+00 : f32
    %15 = vector.broadcast %cst_10 : f32 to vector<16x128xf32>
    %16 = arith.maximumf %14, %15 : vector<16x128xf32>
    %17 = arith.truncf %16 : vector<16x128xf32> to vector<16x128xbf16>
    %c0_11 = arith.constant 0 : index
    %c0_12 = arith.constant 0 : index
    %18 = vector.load %arg6[%c0_11, %c0_12] : memref<128x128xbf16, #tpu.memory_space<vmem>>, vector<128x128xbf16>
    %cst_13 = arith.constant dense<0.000000e+00> : vector<16x128xf32>
    %19 = tpu.matmul %17, %18, %cst_13 {dimension_numbers = #tpu.dot_dimension_numbers<[1], [0], [0], [1], [0, 0, 1, 1], [], []>} : vector<16x128xbf16>, vector<128x128xbf16>, vector<16x128xf32> -> vector<16x128xf32>
    %20 = arith.addf %19, %7 : vector<16x128xf32>
    %c0_14 = arith.constant 0 : index
    %c0_15 = arith.constant 0 : index
    %21 = vector.load %arg7[%c0_14, %c0_15] : memref<1x128xf32, #tpu.memory_space<vmem>>, vector<1x128xf32>
    %22 = vector.broadcast %21 : vector<1x128xf32> to vector<16x128xf32>
    %23 = arith.addf %20, %22 : vector<16x128xf32>
    %cst_16 = arith.constant 0.000000e+00 : f32
    %24 = vector.broadcast %cst_16 : f32 to vector<16x128xf32>
    %25 = arith.maximumf %23, %24 : vector<16x128xf32>
    %26 = arith.truncf %25 : vector<16x128xf32> to vector<16x128xbf16>
    %c0_17 = arith.constant 0 : index
    %c0_18 = arith.constant 0 : index
    %27 = vector.load %arg8[%c0_17, %c0_18] : memref<128x32xbf16, #tpu.memory_space<vmem>>, vector<128x32xbf16>
    %cst_19 = arith.constant dense<0.000000e+00> : vector<16x32xf32>
    %28 = tpu.matmul %26, %27, %cst_19 {dimension_numbers = #tpu.dot_dimension_numbers<[1], [0], [0], [1], [0, 0, 1, 1], [], []>} : vector<16x128xbf16>, vector<128x32xbf16>, vector<16x32xf32> -> vector<16x32xf32>
    %29 = arith.addf %28, %8 : vector<16x32xf32>
    %c0_20 = arith.constant 0 : index
    %c0_21 = arith.constant 0 : index
    %30 = vector.load %arg9[%c0_20, %c0_21] : memref<1x32xf32, #tpu.memory_space<vmem>>, vector<1x32xf32>
    %31 = vector.broadcast %30 : vector<1x32xf32> to vector<16x32xf32>
    %32 = arith.addf %29, %31 : vector<16x32xf32>
    %c0_22 = arith.constant 0 : index
    %c0_23 = arith.constant 0 : index
    %33 = vector.load %arg10[%c0_22, %c0_23] : memref<16x32xf32, #tpu.memory_space<vmem>>, vector<16x32xf32>
    tpu.vector_store %arg10[%c0_22, %c0_23], %32 {strides = array<i32>} : memref<16x32xf32, #tpu.memory_space<vmem>>, vector<16x32xf32>,
    return
  }
  func.func @transform_0(%arg0: i32) -> (i32, i32) {
    %c0_i32 = arith.constant 0 : i32
    %c0_i32_0 = arith.constant 0 : i32
    return %arg0, %c0_i32 : i32, i32
  }
  func.func @transform_1(%arg0: i32) -> (i32, i32) {
    %c0_i32 = arith.constant 0 : i32
    %c0_i32_0 = arith.constant 0 : i32
    return %arg0, %c0_i32 : i32, i32
  }
  func.func @transform_2(%arg0: i32) -> (i32, i32) {
    %c0_i32 = arith.constant 0 : i32
    %c0_i32_0 = arith.constant 0 : i32
    %c0_i32_1 = arith.constant 0 : i32
    return %c0_i32, %c0_i32_0 : i32, i32
  }
  func.func @transform_3(%arg0: i32) -> (i32, i32) {
    %c0_i32 = arith.constant 0 : i32
    %c0_i32_0 = arith.constant 0 : i32
    %c0_i32_1 = arith.constant 0 : i32
    return %c0_i32, %c0_i32_0 : i32, i32
  }
  func.func @transform_4(%arg0: i32) -> (i32, i32) {
    %c0_i32 = arith.constant 0 : i32
    %c0_i32_0 = arith.constant 0 : i32
    %c0_i32_1 = arith.constant 0 : i32
    return %c0_i32, %c0_i32_0 : i32, i32
  }
  func.func @transform_5(%arg0: i32) -> (i32, i32) {
    %c0_i32 = arith.constant 0 : i32
    %c0_i32_0 = arith.constant 0 : i32
    %c0_i32_1 = arith.constant 0 : i32
    return %c0_i32, %c0_i32_0 : i32, i32
  }
  func.func @transform_6(%arg0: i32) -> (i32, i32) {
    %c0_i32 = arith.constant 0 : i32
    %c0_i32_0 = arith.constant 0 : i32
    %c0_i32_1 = arith.constant 0 : i32
    return %c0_i32, %c0_i32_0 : i32, i32
  }
  func.func @transform_7(%arg0: i32) -> (i32, i32) {
    %c0_i32 = arith.constant 0 : i32
    %c0_i32_0 = arith.constant 0 : i32
    %c0_i32_1 = arith.constant 0 : i32
    return %c0_i32, %c0_i32_0 : i32, i32
  }
  func.func @transform_8(%arg0: i32) -> (i32, i32) {
    %c0_i32 = arith.constant 0 : i32
    %c0_i32_0 = arith.constant 0 : i32
    %c0_i32_1 = arith.constant 0 : i32
    return %c0_i32, %c0_i32_0 : i32, i32
  }
  func.func @transform_9(%arg0: i32) -> (i32, i32) {
    %c0_i32 = arith.constant 0 : i32
    %c0_i32_0 = arith.constant 0 : i32
    return %arg0, %c0_i32 : i32, i32
  }
}

module attributes {stable_mosaic.version = 11 : i64} {
  func.func @predictor_kernel(%arg0: i32, %arg1: memref<16x32xf32, #tpu.memory_space<vmem>>, %arg2: memref<16x8xf32, #tpu.memory_space<vmem>>, %arg3: memref<32x128xbf16, #tpu.memory_space<vmem>>, %arg4: memref<8x288xbf16, #tpu.memory_space<vmem>>, %arg5: memref<1x128xf32, #tpu.memory_space<vmem>>, %arg6: memref<128x128xbf16, #tpu.memory_space<vmem>>, %arg7: memref<1x128xf32, #tpu.memory_space<vmem>>, %arg8: memref<128x32xbf16, #tpu.memory_space<vmem>>, %arg9: memref<1x32xf32, #tpu.memory_space<vmem>>, %arg10: memref<16x32xf32, #tpu.memory_space<vmem>>) attributes {dimension_semantics = [#tpu.dimension_semantics<parallel>], iteration_bounds = array<i64: 1>, scalar_prefetch = 0 : i64, scratch_operands = 0 : i64, tpu.core_type = #tpu.core_type<tc>, window_params = [{transform_indices = @transform_0, window_bounds = array<i64: 16, 32>}, {transform_indices = @transform_1, window_bounds = array<i64: 16, 8>}, {pipeline_mode = #tpu.pipeline_mode<synchronous>, transform_indices = @transform_2, window_bounds = array<i64: 32, 128>}, {pipeline_mode = #tpu.pipeline_mode<synchronous>, transform_indices = @transform_3, window_bounds = array<i64: 8, 288>}, {pipeline_mode = #tpu.pipeline_mode<synchronous>, transform_indices = @transform_4, window_bounds = array<i64: 1, 128>}, {pipeline_mode = #tpu.pipeline_mode<synchronous>, transform_indices = @transform_5, window_bounds = array<i64: 128, 128>}, {pipeline_mode = #tpu.pipeline_mode<synchronous>, transform_indices = @transform_6, window_bounds = array<i64: 1, 128>}, {pipeline_mode = #tpu.pipeline_mode<synchronous>, transform_indices = @transform_7, window_bounds = array<i64: 128, 32>}, {pipeline_mode = #tpu.pipeline_mode<synchronous>, transform_indices = @transform_8, window_bounds = array<i64: 1, 32>}, {transform_indices = @transform_9, window_bounds = array<i64: 16, 32>}]} {
    %c0 = arith.constant 0 : index
    %c0_0 = arith.constant 0 : index
    %0 = vector.load %arg1[%c0, %c0_0] : memref<16x32xf32, #tpu.memory_space<vmem>>, vector<16x32xf32>
    %1 = arith.truncf %0 : vector<16x32xf32> to vector<16x32xbf16>
    %c0_1 = arith.constant 0 : index
    %c0_2 = arith.constant 0 : index
    %2 = vector.load %arg2[%c0_1, %c0_2] : memref<16x8xf32, #tpu.memory_space<vmem>>, vector<16x8xf32>
    %3 = arith.truncf %2 : vector<16x8xf32> to vector<16x8xbf16>
    %c0_3 = arith.constant 0 : index
    %c0_4 = arith.constant 0 : index
    %4 = vector.load %arg4[%c0_3, %c0_4] : memref<8x288xbf16, #tpu.memory_space<vmem>>, vector<8x288xbf16>
    %cst = arith.constant dense<0.000000e+00> : vector<16x288xf32>
    %5 = tpu.matmul %3, %4, %cst {dimension_numbers = #tpu.dot_dimension_numbers<[1], [0], [0], [1], [0, 0, 1, 1], [], []>} : vector<16x8xbf16>, vector<8x288xbf16>, vector<16x288xf32> -> vector<16x288xf32>
    %6 = vector.extract_strided_slice %5 {offsets = [0, 0], sizes = [16, 128], strides = [1, 1]} : vector<16x288xf32> to vector<16x128xf32>
    %7 = vector.extract_strided_slice %5 {offsets = [0, 128], sizes = [16, 128], strides = [1, 1]} : vector<16x288xf32> to vector<16x128xf32>
    %8 = vector.extract_strided_slice %5 {offsets = [0, 256], sizes = [16, 32], strides = [1, 1]} : vector<16x288xf32> to vector<16x32xf32>
    %c0_5 = arith.constant 0 : index
    %c0_6 = arith.constant 0 : index
    %9 = vector.load %arg3[%c0_5, %c0_6] : memref<32x128xbf16, #tpu.memory_space<vmem>>, vector<32x128xbf16>
    %cst_7 = arith.constant dense<0.000000e+00> : vector<16x128xf32>
    %10 = tpu.matmul %1, %9, %cst_7 {dimension_numbers = #tpu.dot_dimension_numbers<[1], [0], [0], [1], [0, 0, 1, 1], [], []>} : vector<16x32xbf16>, vector<32x128xbf16>, vector<16x128xf32> -> vector<16x128xf32>
    %11 = arith.addf %10, %6 : vector<16x128xf32>
    %c0_8 = arith.constant 0 : index
    %c0_9 = arith.constant 0 : index
    %12 = vector.load %arg5[%c0_8, %c0_9] : memref<1x128xf32, #tpu.memory_space<vmem>>, vector<1x128xf32>
    %13 = vector.broadcast %12 : vector<1x128xf32> to vector<16x128xf32>
    %14 = arith.addf %11, %13 : vector<16x128xf32>
    %cst_10 = arith.constant 0.000000e+00 : f32
    %15 = vector.broadcast %cst_10 : f32 to vector<16x128xf32>
    %16 = arith.maximumf %14, %15 : vector<16x128xf32>
    %17 = arith.truncf %16 : vector<16x128xf32> to vector<16x128xbf16>
    %c0_11 = arith.constant 0 : index
    %c0_12 = arith.constant 0 : index
    %18 = vector.load %arg6[%c0_11, %c0_12] : memref<128x128xbf16, #tpu.memory_space<vmem>>, vector<128x128xbf16>
    %cst_13 = arith.constant dense<0.000000e+00> : vector<16x128xf32>
    %19 = tpu.matmul %17, %18, %cst_13 {dimension_numbers = #tpu.dot_dimension_numbers<[1], [0], [0], [1], [0, 0, 1, 1], [], []>} : vector<16x128xbf16>, vector<128x128xbf16>, vector<16x128xf32> -> vector<16x128xf32>
    %20 = arith.addf %19, %7 : vector<16x128xf32>
    %c0_14 = arith.constant 0 : index
    %c0_15 = arith.constant 0 : index
    %21 = vector.load %arg7[%c0_14, %c0_15] : memref<1x128xf32, #tpu.memory_space<vmem>>, vector<1x128xf32>
    %22 = vector.broadcast %21 : vector<1x128xf32> to vector<16x128xf32>
    %23 = arith.addf %20, %22 : vector<16x128xf32>
    %cst_16 = arith.constant 0.000000e+00 : f32
    %24 = vector.broadcast %cst_16 : f32 to vector<16x128xf32>
    %25 = arith.maximumf %23, %24 : vector<16x128xf32>
    %26 = arith.truncf %25 : vector<16x128xf32> to vector<16x128xbf16>
    %c0_17 = arith.constant 0 : index
    %c0_18 = arith.constant 0 : index
    %27 = vector.load %arg8[%c0_17, %c0_18] : memref<128x32xbf16, #tpu.memory_space<vmem>>, vector<128x32xbf16>
    %cst_19 = arith.constant dense<0.000000e+00> : vector<16x32xf32>
    %28 = tpu.matmul %26, %27, %cst_19 {dimension_numbers = #tpu.dot_dimension_numbers<[1], [0], [0], [1], [0, 0, 1, 1], [], []>} : vector<16x128xbf16>, vector<128x32xbf16>, vector<16x32xf32> -> vector<16x32xf32>
    %29 = arith.addf %28, %8 : vector<16x32xf32>
    %c0_20 = arith.constant 0 : index
    %c0_21 = arith.constant 0 : index
    %30 = vector.load %arg9[%c0_20, %c0_21] : memref<1x32xf32, #tpu.memory_space<vmem>>, vector<1x32xf32>
    %31 = vector.broadcast %30 : vector<1x32xf32> to vector<16x32xf32>
    %32 = arith.addf %29, %31 : vector<16x32xf32>
    %c0_22 = arith.constant 0 : index
    %c0_23 = arith.constant 0 : index
    %33 = vector.load %arg10[%c0_22, %c0_23] : memref<16x32xf32, #tpu.memory_space<vmem>>, vector<16x32xf32>
    tpu.vector_store %arg10[%c0_22, %c0_23], %32 {strides = array<i32>} : memref<16x32xf32, #tpu.memory_space<vmem>>, vector<16x32xf32>,
    return
  }
  func.func @transform_0(%arg0: i32) -> (i32, i32) {
    %c0_i32 = arith.constant 0 : i32
    %c0_i32_0 = arith.constant 0 : i32
    return %arg0, %c0_i32 : i32, i32
  }
  func.func @transform_1(%arg0: i32) -> (i32, i32) {
    %c0_i32 = arith.constant 0 : i32
    %c0_i32_0 = arith.constant 0 : i32
    return %arg0, %c0_i32 : i32, i32
  }
  func.func @transform_2(%arg0: i32) -> (i32, i32) {
    %c0_i32 = arith.constant 0 : i32
    %c0_i32_0 = arith.constant 0 : i32
    %c0_i32_1 = arith.constant 0 : i32
    return %c0_i32, %c0_i32_0 : i32, i32
  }
  func.func @transform_3(%arg0: i32) -> (i32, i32) {
    %c0_i32 = arith.constant 0 : i32
    %c0_i32_0 = arith.constant 0 : i32
    %c0_i32_1 = arith.constant 0 : i32
    return %c0_i32, %c0_i32_0 : i32, i32
  }
  func.func @transform_4(%arg0: i32) -> (i32, i32) {
    %c0_i32 = arith.constant 0 : i32
    %c0_i32_0 = arith.constant 0 : i32
    %c0_i32_1 = arith.constant 0 : i32
    return %c0_i32, %c0_i32_0 : i32, i32
  }
  func.func @transform_5(%arg0: i32) -> (i32, i32) {
    %c0_i32 = arith.constant 0 : i32
    %c0_i32_0 = arith.constant 0 : i32
    %c0_i32_1 = arith.constant 0 : i32
    return %c0_i32, %c0_i32_0 : i32, i32
  }
  func.func @transform_6(%arg0: i32) -> (i32, i32) {
    %c0_i32 = arith.constant 0 : i32
    %c0_i32_0 = arith.constant 0 : i32
    %c0_i32_1 = arith.constant 0 : i32
    return %c0_i32, %c0_i32_0 : i32, i32
  }
  func.func @transform_7(%arg0: i32) -> (i32, i32) {
    %c0_i32 = arith.constant 0 : i32
    %c0_i32_0 = arith.constant 0 : i32
    %c0_i32_1 = arith.constant 0 : i32
    return %c0_i32, %c0_i32_0 : i32, i32
  }
  func.func @transform_8(%arg0: i32) -> (i32, i32) {
    %c0_i32 = arith.constant 0 : i32
    %c0_i32_0 = arith.constant 0 : i32
    %c0_i32_1 = arith.constant 0 : i32
    return %c0_i32, %c0_i32_0 : i32, i32
  }
  func.func @transform_9(%arg0: i32) -> (i32, i32) {
    %c0_i32 = arith.constant 0 : i32
    %c0_i32_0 = arith.constant 0 : i32
    return %arg0, %c0_i32 : i32, i32
  }
}

</mosaic_0001>

<llo_original>
// kernel: tpu_custom_call.1
$region0: #{tpu_custom_call.1}
  #allocation0 [shape = 'u32[]', space=smem, size = 0x4, offset = 0x4, fixed_abs, tag = 'smem constant byte address 0x4 - core index']
  #allocation1 [shape = 'u32[144,128]{1,0:T(1,128)}', space=vmem, size = 0x12000, scoped, tag = 'internal scratch']
  %s0 = inlined_call_operand.vmem [shape: f32[16,32], index: 0, kind: input, shape index: {}]
  %s1 = inlined_call_operand.vmem [shape: f32[16,8], index: 1, kind: input, shape index: {}]
  %s2 = inlined_call_operand.vmem [shape: bf16[32,128], index: 2, kind: input, shape index: {}]
  %s3 = inlined_call_operand.vmem [shape: bf16[8,288], index: 3, kind: input, shape index: {}]
  %s4 = inlined_call_operand.vmem [shape: f32[1,128], index: 4, kind: input, shape index: {}]
  %s5 = inlined_call_operand.vmem [shape: bf16[128,128], index: 5, kind: input, shape index: {}]
  %s6 = inlined_call_operand.vmem [shape: f32[1,128], index: 6, kind: input, shape index: {}]
  %s7 = inlined_call_operand.vmem [shape: bf16[128,32], index: 7, kind: input, shape index: {}]
  %s8 = inlined_call_operand.vmem [shape: f32[1,32], index: 8, kind: input, shape index: {}]
  %s9 = inlined_call_operand.hbm [shape: f32[16,32], index: 9, kind: output, shape index: {}]
  %s10 = sld [smem:[#allocation0]]
  $region46: #{tpu_custom_call.1} parent=0
    _
  %s12 = ssub.s32 1, %s10
  %s13 = scalar_select 0, %s12, %s10
  $region1: #{tpu_custom_call.1} parent=0
    #allocation2 [shape = 'u8[8192]{0}', space=vmem, size = 0x2000, scoped, tag = 'output window, operand 0, single buffered']
    #allocation3 [shape = 's32[1]{0}', space=sflag, size = 0x4, scoped, tag = 'scoped memory for tpu_custom_call.1']
    %14 = vsyncpa [#allocation3], 0
    // Predicated region
    $region2: #{tpu_custom_call.1} parent=1 // pred_check
      _
    $region3: #{tpu_custom_call.1} parent=1 // pred_check_branch
      %16 = sbr.rel (0) target = $region5
    $region4: #{tpu_custom_call.1} parent=1 // pred_region
      _
    $region5: #{tpu_custom_call.1} parent=1 // pred_fallthru
      _
    // Predicated region
    $region6: #{tpu_custom_call.1} parent=1 // pred_check
      _
    $region7: #{tpu_custom_call.1} parent=1 // pred_check_branch
      %18 = sbr.rel (0) target = $region9
    $region8: #{tpu_custom_call.1} parent=1 // pred_region
      _
    $region9: #{tpu_custom_call.1} parent=1 // pred_fallthru
      _
    // Predicated region
    $region10: #{tpu_custom_call.1} parent=1 // pred_check
      _
    $region11: #{tpu_custom_call.1} parent=1 // pred_check_branch
      %20 = sbr.rel (0) target = $region13
    $region12: #{tpu_custom_call.1} parent=1 // pred_region
      _
    $region13: #{tpu_custom_call.1} parent=1 // pred_fallthru
      _
    // Predicated region
    $region14: #{tpu_custom_call.1} parent=1 // pred_check
      _
    $region15: #{tpu_custom_call.1} parent=1 // pred_check_branch
      %22 = sbr.rel (0) target = $region17
    $region16: #{tpu_custom_call.1} parent=1 // pred_region
      _
    $region17: #{tpu_custom_call.1} parent=1 // pred_fallthru
      _
    // Predicated region
    $region18: #{tpu_custom_call.1} parent=1 // pred_check
      _
    $region19: #{tpu_custom_call.1} parent=1 // pred_check_branch
      %24 = sbr.rel (0) target = $region21
    $region20: #{tpu_custom_call.1} parent=1 // pred_region
      _
    $region21: #{tpu_custom_call.1} parent=1 // pred_fallthru
      _
    // Predicated region
    $region22: #{tpu_custom_call.1} parent=1 // pred_check
      _
    $region23: #{tpu_custom_call.1} parent=1 // pred_check_branch
      %26 = sbr.rel (0) target = $region25
    $region24: #{tpu_custom_call.1} parent=1 // pred_region
      _
    $region25: #{tpu_custom_call.1} parent=1 // pred_fallthru
      _
    // Predicated region
    $region26: #{tpu_custom_call.1} parent=1 // pred_check
      _
    $region27: #{tpu_custom_call.1} parent=1 // pred_check_branch
      %28 = sbr.rel (0) target = $region29
    $region28: #{tpu_custom_call.1} parent=1 // pred_region
      _
    $region29: #{tpu_custom_call.1} parent=1 // pred_fallthru
      _
    // Predicated region
    $region30: #{tpu_custom_call.1} parent=1 // pred_check
      _
    $region31: #{tpu_custom_call.1} parent=1 // pred_check_branch
      %30 = sbr.rel (0) target = $region33
    $region32: #{tpu_custom_call.1} parent=1 // pred_region
      _
    $region33: #{tpu_custom_call.1} parent=1 // pred_fallthru
      _
    // Predicated region
    $region34: #{tpu_custom_call.1} parent=1 // pred_check
      _
    $region35: #{tpu_custom_call.1} parent=1 // pred_check_branch
      %32 = sbr.rel (0) target = $region37
    $region36: #{tpu_custom_call.1} parent=1 // pred_region
      _
    $region37: #{tpu_custom_call.1} parent=1 // pred_fallthru
      _
    %v34 = vld [vmem:[%s0] sm:$0xff]
    %v35 = vld [vmem:[%s0 + $0x8] sm:$0xff]
    %v36 = vpack.c.bf16 %v35, %v34
    %v37 = vld [vmem:[%s1] sm:$0xff]
    %v38 = vld [vmem:[%s1 + $0x8] sm:$0xff]
    %v39 = vpack.c.bf16 %v38, %v37
    %v40 = vld [vmem:[%s3] sm:$0xff]
    %v41 = vld [vmem:[%s3 + $0x8] sm:$0xf]
    %v44 = vunpack.c.l.b16 %v40
    %v45 = vunpack.c.h.b16 %v40
    %v46 = vunpack.c.l.b16 %v41
    %v47 = vpack.c.b16 %v44, %v44
    %v48 = vpack.c.b16 %v45, %v45
    %v49 = vpack.c.b16 %v46, %v46
    %vm50 = vcmask 64512
    %v52 = vsel %vm50, %v39, 0
    %vm54 = vcmask 1043456
    %v56 = vsel %vm54, %v47, 0
    %v59 = vsel %vm54, %v48, 0
    %v62 = vsel %vm54, %v49, 0
    %64 = vmatprep.subr.bf16.mxu0 %v59
    %65 = vmatpush1.bf16.msra.mxu0 %v56
    %66 = vmatprep.subr.bf16.mxu0 0
    %67 = vmatpush1.bf16.msra.mxu0 0
    %68 = vmatprep.subr.bf16.mxu0 0
    %69 = vmatpush1.bf16.msra.mxu0 0
    %70 = vmatprep.subr.bf16.mxu0 0
    %71 = vmatpush1.bf16.msra.mxu0 0
    %72 = vmatprep.subr.bf16.mxu0 0
    %73 = vmatpush1.bf16.msra.mxu0 0
    %74 = vmatprep.subr.bf16.mxu0 0
    %75 = vmatpush1.bf16.msra.mxu0 0
    %76 = vmatprep.subr.bf16.mxu0 0
    %77 = vmatpush1.bf16.msra.mxu0 0
    %78 = vmatprep.subr.bf16.mxu0 0
    %79 = vmatpush1.bf16.msra.mxu0 0
    %80 = vmatprep.subr.bf16.mxu0 0
    %81 = vmatpush1.bf16.msra.mxu0 0
    %82 = vmatprep.subr.bf16.mxu0 0
    %83 = vmatpush1.bf16.msra.mxu0 0
    %84 = vmatprep.subr.bf16.mxu0 0
    %85 = vmatpush1.bf16.msra.mxu0 0
    %86 = vmatprep.subr.bf16.mxu0 0
    %87 = vmatpush1.bf16.msra.mxu0 0
    %88 = vmatprep.subr.bf16.mxu0 0
    %89 = vmatpush1.bf16.msra.mxu0 0
    %90 = vmatprep.subr.bf16.mxu0 0
    %91 = vmatpush1.bf16.msra.mxu0 0
    %92 = vmatprep.subr.bf16.mxu0 0
    %93 = vmatpush1.bf16.msra.mxu0 0
    %94 = vmatprep.subr.bf16.mxu0 0
    %95 = vmatpush1.bf16.msra.mxu0 0
    %96 = vmatprep.mubr.bf16.mxu0 0
    %97 = vmatmul.mubr.bf16.gmra.mrb[0].mxu0 %v52
    %v98 = vpop.f32.mrb[0].mxu0
    %v99 = vadd.f32 0.0, %v98
    %v100 = vpop.f32.mrb[0].mxu0
    %v101 = vadd.f32 0.0, %v100
    %v102 = vpop.f32.mrb[0].mxu0
    %v103 = vadd.f32 0.0, %v102
    %v104 = vpop.f32.mrb[0].mxu0
    %v105 = vadd.f32 0.0, %v104
    %106 = vdwg.mxu0
    %107 = vmatprep.subr.bf16.mxu0 0
    %108 = vmatpush1.bf16.msra.mxu0 %v62
    %109 = vmatprep.subr.bf16.mxu0 0
    %110 = vmatpush1.bf16.msra.mxu0 0
    %111 = vmatprep.subr.bf16.mxu0 0
    %112 = vmatpush1.bf16.msra.mxu0 0
    %113 = vmatprep.subr.bf16.mxu0 0
    %114 = vmatpush1.bf16.msra.mxu0 0
    %115 = vmatprep.subr.bf16.mxu0 0
    %116 = vmatpush1.bf16.msra.mxu0 0
    %117 = vmatprep.subr.bf16.mxu0 0
    %118 = vmatpush1.bf16.msra.mxu0 0
    %119 = vmatprep.subr.bf16.mxu0 0
    %120 = vmatpush1.bf16.msra.mxu0 0
    %121 = vmatprep.subr.bf16.mxu0 0
    %122 = vmatpush1.bf16.msra.mxu0 0
    %123 = vmatprep.subr.bf16.mxu0 0
    %124 = vmatpush1.bf16.msra.mxu0 0
    %125 = vmatprep.subr.bf16.mxu0 0
    %126 = vmatpush1.bf16.msra.mxu0 0
    %127 = vmatprep.subr.bf16.mxu0 0
    %128 = vmatpush1.bf16.msra.mxu0 0
    %129 = vmatprep.subr.bf16.mxu0 0
    %130 = vmatpush1.bf16.msra.mxu0 0
    %131 = vmatprep.subr.bf16.mxu0 0
    %132 = vmatpush1.bf16.msra.mxu0 0
    %133 = vmatprep.subr.bf16.mxu0 0
    %134 = vmatpush1.bf16.msra.mxu0 0
    %135 = vmatprep.subr.bf16.mxu0 0
    %136 = vmatpush1.bf16.msra.mxu0 0
    %137 = vmatprep.subr.bf16.mxu0 0
    %138 = vmatpush1.bf16.msra.mxu0 0
    %139 = vmatprep.mubr.bf16.mxu0 0
    %140 = vmatmul.mubr.bf16.gmra.mrb[0].mxu0 %v52
    %v141 = vpop.f32.mrb[0].mxu0
    %v142 = vadd.f32 0.0, %v141
    %v143 = vpop.f32.mrb[0].mxu0
    %v144 = vpop.f32.mrb[0].mxu0
    %v145 = vadd.f32 0.0, %v144
    %v146 = vpop.f32.mrb[0].mxu0
    %147 = vdwg.mxu0
    %v148 = vld [vmem:[%s2] sm:$0xf]
    %v149 = vld [vmem:[%s2 + $0x4] sm:$0xf]
    %v150 = vld [vmem:[%s2 + $0x8] sm:$0xf]
    %v151 = vld [vmem:[%s2 + $0xc] sm:$0xf]
    %v156 = vunpack.c.l.b16 %v148
    %v157 = vunpack.c.l.b16 %v149
    %v158 = vunpack.c.l.b16 %v150
    %v159 = vunpack.c.l.b16 %v151
    %v160 = vpack.c.b16 %v157, %v156
    %v161 = vpack.c.b16 %v159, %v158
    %vm164 = vcmask 261120
    %v166 = vsel %vm164, %v36, 0
    %168 = vmatprep.subr.bf16.mxu0 0
    %169 = vmatpush1.bf16.msra.mxu0 %v160
    %170 = vmatprep.subr.bf16.mxu0 0
    %171 = vmatpush1.bf16.msra.mxu0 %v161
    %172 = vmatprep.subr.bf16.mxu0 0
    %173 = vmatpush1.bf16.msra.mxu0 0
    %174 = vmatprep.subr.bf16.mxu0 0
    %175 = vmatpush1.bf16.msra.mxu0 0
    %176 = vmatprep.subr.bf16.mxu0 0
    %177 = vmatpush1.bf16.msra.mxu0 0
    %178 = vmatprep.subr.bf16.mxu0 0
    %179 = vmatpush1.bf16.msra.mxu0 0
    %180 = vmatprep.subr.bf16.mxu0 0
    %181 = vmatpush1.bf16.msra.mxu0 0
    %182 = vmatprep.subr.bf16.mxu0 0
    %183 = vmatpush1.bf16.msra.mxu0 0
    %184 = vmatprep.subr.bf16.mxu0 0
    %185 = vmatpush1.bf16.msra.mxu0 0
    %186 = vmatprep.subr.bf16.mxu0 0
    %187 = vmatpush1.bf16.msra.mxu0 0
    %188 = vmatprep.subr.bf16.mxu0 0
    %189 = vmatpush1.bf16.msra.mxu0 0
    %190 = vmatprep.subr.bf16.mxu0 0
    %191 = vmatpush1.bf16.msra.mxu0 0
    %192 = vmatprep.subr.bf16.mxu0 0
    %193 = vmatpush1.bf16.msra.mxu0 0
    %194 = vmatprep.subr.bf16.mxu0 0
    %195 = vmatpush1.bf16.msra.mxu0 0
    %196 = vmatprep.subr.bf16.mxu0 0
    %197 = vmatpush1.bf16.msra.mxu0 0
    %198 = vmatprep.subr.bf16.mxu0 0
    %199 = vmatpush1.bf16.msra.mxu0 0
    %200 = vmatprep.mubr.bf16.mxu0 0
    %201 = vmatmul.mubr.bf16.gmra.mrb[0].mxu0 %v166
    %v202 = vpop.f32.mrb[0].mxu0
    %v203 = vadd.f32 %v99, %v202
    %v204 = vpop.f32.mrb[0].mxu0
    %v205 = vpop.f32.mrb[0].mxu0
    %v206 = vadd.f32 %v103, %v205
    %v207 = vpop.f32.mrb[0].mxu0
    %208 = vdwg.mxu0
    %v209 = vld [vmem:[%s4] sm:$0x1]
    %v211 = vlaneseq
    %v212 = vshrl.u32 %v211, 7
    %v213 = vsub.s32 0, %v212
    %v214 = vrot.slane %v209, %v213
    %v216 = vadd.f32 %v203, %v214
    %v217 = vadd.f32 %v206, %v214
    %v218 = vmax.f32 %v216, 0.0
    %v219 = vmax.f32 %v217, 0.0
    %v220 = vpack.c.bf16 %v219, %v218
    %v221 = vld [vmem:[%s5] sm:$0xf]
    %v222 = vld [vmem:[%s5 + $0x4] sm:$0xf]
    %v223 = vld [vmem:[%s5 + $0x8] sm:$0xf]
    %v224 = vld [vmem:[%s5 + $0xc] sm:$0xf]
    %v225 = vld [vmem:[%s5 + $0x10] sm:$0xf]
    %v226 = vld [vmem:[%s5 + $0x14] sm:$0xf]
    %v227 = vld [vmem:[%s5 + $0x18] sm:$0xf]
    %v228 = vld [vmem:[%s5 + $0x1c] sm:$0xf]
    %v229 = vld [vmem:[%s5 + $0x20] sm:$0xf]
    %v230 = vld [vmem:[%s5 + $0x24] sm:$0xf]
    %v231 = vld [vmem:[%s5 + $0x28] sm:$0xf]
    %v232 = vld [vmem:[%s5 + $0x2c] sm:$0xf]
    %v233 = vld [vmem:[%s5 + $0x30] sm:$0xf]
    %v234 = vld [vmem:[%s5 + $0x34] sm:$0xf]
    %v235 = vld [vmem:[%s5 + $0x38] sm:$0xf]
    %v236 = vld [vmem:[%s5 + $0x3c] sm:$0xf]
    %v253 = vunpack.c.l.b16 %v221
    %v254 = vunpack.c.l.b16 %v222
    %v255 = vunpack.c.l.b16 %v223
    %v256 = vunpack.c.l.b16 %v224
    %v257 = vunpack.c.l.b16 %v225
    %v258 = vunpack.c.l.b16 %v226
    %v259 = vunpack.c.l.b16 %v227
    %v260 = vunpack.c.l.b16 %v228
    %v261 = vunpack.c.l.b16 %v229
    %v262 = vunpack.c.l.b16 %v230
    %v263 = vunpack.c.l.b16 %v231
    %v264 = vunpack.c.l.b16 %v232
    %v265 = vunpack.c.l.b16 %v233
    %v266 = vunpack.c.l.b16 %v234
    %v267 = vunpack.c.l.b16 %v235
    %v268 = vunpack.c.l.b16 %v236
    %v269 = vpack.c.b16 %v254, %v253
    %v270 = vpack.c.b16 %v256, %v255
    %v271 = vpack.c.b16 %v258, %v257
    %v272 = vpack.c.b16 %v260, %v259
    %v273 = vpack.c.b16 %v262, %v261
    %v274 = vpack.c.b16 %v264, %v263
    %v275 = vpack.c.b16 %v266, %v265
    %v276 = vpack.c.b16 %v268, %v267
    %285 = vmatprep.subr.bf16.mxu0 0
    %286 = vmatpush1.bf16.msra.mxu0 %v269
    %287 = vmatprep.subr.bf16.mxu0 0
    %288 = vmatpush1.bf16.msra.mxu0 %v270
    %289 = vmatprep.subr.bf16.mxu0 0
    %290 = vmatpush1.bf16.msra.mxu0 %v271
    %291 = vmatprep.subr.bf16.mxu0 0
    %292 = vmatpush1.bf16.msra.mxu0 %v272
    %293 = vmatprep.subr.bf16.mxu0 0
    %294 = vmatpush1.bf16.msra.mxu0 %v273
    %295 = vmatprep.subr.bf16.mxu0 0
    %296 = vmatpush1.bf16.msra.mxu0 %v274
    %297 = vmatprep.subr.bf16.mxu0 0
    %298 = vmatpush1.bf16.msra.mxu0 %v275
    %299 = vmatprep.subr.bf16.mxu0 0
    %300 = vmatpush1.bf16.msra.mxu0 %v276
    %301 = vmatprep.subr.bf16.mxu0 0
    %302 = vmatpush1.bf16.msra.mxu0 0
    %303 = vmatprep.subr.bf16.mxu0 0
    %304 = vmatpush1.bf16.msra.mxu0 0
    %305 = vmatprep.subr.bf16.mxu0 0
    %306 = vmatpush1.bf16.msra.mxu0 0
    %307 = vmatprep.subr.bf16.mxu0 0
    %308 = vmatpush1.bf16.msra.mxu0 0
    %309 = vmatprep.subr.bf16.mxu0 0
    %310 = vmatpush1.bf16.msra.mxu0 0
    %311 = vmatprep.subr.bf16.mxu0 0
    %312 = vmatpush1.bf16.msra.mxu0 0
    %313 = vmatprep.subr.bf16.mxu0 0
    %314 = vmatpush1.bf16.msra.mxu0 0
    %315 = vmatprep.subr.bf16.mxu0 0
    %316 = vmatpush1.bf16.msra.mxu0 0
    %317 = vmatprep.mubr.bf16.mxu0 0
    %318 = vmatmul.mubr.bf16.gmra.mrb[0].mxu0 %v220
    %v319 = vpop.f32.mrb[0].mxu0
    %v320 = vadd.f32 %v101, %v319
    %v321 = vpop.f32.mrb[0].mxu0
    %v322 = vpop.f32.mrb[0].mxu0
    %v323 = vadd.f32 %v105, %v322
    %v324 = vpop.f32.mrb[0].mxu0
    %325 = vdwg.mxu0
    %v326 = vld [vmem:[%s6] sm:$0x1]
    %v328 = vlaneseq
    %v329 = vshrl.u32 %v328, 7
    %v330 = vsub.s32 0, %v329
    %v331 = vrot.slane %v326, %v330
    %v333 = vadd.f32 %v320, %v331
    %v334 = vadd.f32 %v323, %v331
    %v335 = vmax.f32 %v333, 0.0
    %v336 = vmax.f32 %v334, 0.0
    %v337 = vpack.c.bf16 %v336, %v335
    %v338 = vld [vmem:[%s7] sm:$0xf]
    %v339 = vld [vmem:[%s7 + $0x4] sm:$0xf]
    %v340 = vld [vmem:[%s7 + $0x8] sm:$0xf]
    %v341 = vld [vmem:[%s7 + $0xc] sm:$0xf]
    %v342 = vld [vmem:[%s7 + $0x10] sm:$0xf]
    %v343 = vld [vmem:[%s7 + $0x14] sm:$0xf]
    %v344 = vld [vmem:[%s7 + $0x18] sm:$0xf]
    %v345 = vld [vmem:[%s7 + $0x1c] sm:$0xf]
    %v346 = vld [vmem:[%s7 + $0x20] sm:$0xf]
    %v347 = vld [vmem:[%s7 + $0x24] sm:$0xf]
    %v348 = vld [vmem:[%s7 + $0x28] sm:$0xf]
    %v349 = vld [vmem:[%s7 + $0x2c] sm:$0xf]
    %v350 = vld [vmem:[%s7 + $0x30] sm:$0xf]
    %v351 = vld [vmem:[%s7 + $0x34] sm:$0xf]
    %v352 = vld [vmem:[%s7 + $0x38] sm:$0xf]
    %v353 = vld [vmem:[%s7 + $0x3c] sm:$0xf]
    %v370 = vunpack.c.l.b16 %v338
    %v371 = vunpack.c.l.b16 %v339
    %v372 = vunpack.c.l.b16 %v340
    %v373 = vunpack.c.l.b16 %v341
    %v374 = vunpack.c.l.b16 %v342
    %v375 = vunpack.c.l.b16 %v343
    %v376 = vunpack.c.l.b16 %v344
    %v377 = vunpack.c.l.b16 %v345
    %v378 = vunpack.c.l.b16 %v346
    %v379 = vunpack.c.l.b16 %v347
    %v380 = vunpack.c.l.b16 %v348
    %v381 = vunpack.c.l.b16 %v349
    %v382 = vunpack.c.l.b16 %v350
    %v383 = vunpack.c.l.b16 %v351
    %v384 = vunpack.c.l.b16 %v352
    %v385 = vunpack.c.l.b16 %v353
    %v386 = vpack.c.b16 %v371, %v370
    %v387 = vpack.c.b16 %v373, %v372
    %v388 = vpack.c.b16 %v375, %v374
    %v389 = vpack.c.b16 %v377, %v376
    %v390 = vpack.c.b16 %v379, %v378
    %v391 = vpack.c.b16 %v381, %v380
    %v392 = vpack.c.b16 %v383, %v382
    %v393 = vpack.c.b16 %v385, %v384
    %402 = vmatprep.subr.bf16.mxu0 0
    %403 = vmatpush1.bf16.msra.mxu0 %v386
    %404 = vmatprep.subr.bf16.mxu0 0
    %405 = vmatpush1.bf16.msra.mxu0 %v387
    %406 = vmatprep.subr.bf16.mxu0 0
    %407 = vmatpush1.bf16.msra.mxu0 %v388
    %408 = vmatprep.subr.bf16.mxu0 0
    %409 = vmatpush1.bf16.msra.mxu0 %v389
    %410 = vmatprep.subr.bf16.mxu0 0
    %411 = vmatpush1.bf16.msra.mxu0 %v390
    %412 = vmatprep.subr.bf16.mxu0 0
    %413 = vmatpush1.bf16.msra.mxu0 %v391
    %414 = vmatprep.subr.bf16.mxu0 0
    %415 = vmatpush1.bf16.msra.mxu0 %v392
    %416 = vmatprep.subr.bf16.mxu0 0
    %417 = vmatpush1.bf16.msra.mxu0 %v393
    %418 = vmatprep.subr.bf16.mxu0 0
    %419 = vmatpush1.bf16.msra.mxu0 0
    %420 = vmatprep.subr.bf16.mxu0 0
    %421 = vmatpush1.bf16.msra.mxu0 0
    %422 = vmatprep.subr.bf16.mxu0 0
    %423 = vmatpush1.bf16.msra.mxu0 0
    %424 = vmatprep.subr.bf16.mxu0 0
    %425 = vmatpush1.bf16.msra.mxu0 0
    %426 = vmatprep.subr.bf16.mxu0 0
    %427 = vmatpush1.bf16.msra.mxu0 0
    %428 = vmatprep.subr.bf16.mxu0 0
    %429 = vmatpush1.bf16.msra.mxu0 0
    %430 = vmatprep.subr.bf16.mxu0 0
    %431 = vmatpush1.bf16.msra.mxu0 0
    %432 = vmatprep.subr.bf16.mxu0 0
    %433 = vmatpush1.bf16.msra.mxu0 0
    %434 = vmatprep.mubr.bf16.mxu0 0
    %435 = vmatmul.mubr.bf16.gmra.mrb[0].mxu0 %v337
    %v436 = vpop.f32.mrb[0].mxu0
    %v437 = vadd.f32 %v142, %v436
    %v438 = vpop.f32.mrb[0].mxu0
    %v439 = vpop.f32.mrb[0].mxu0
    %v440 = vadd.f32 %v145, %v439
    %v441 = vpop.f32.mrb[0].mxu0
    %442 = vdwg.mxu0
    %v443 = vld [vmem:[%s8] sm:$0x1]
    %v445 = vlaneseq
    %v446 = vshrl.u32 %v445, 7
    %v447 = vsub.s32 0, %v446
    %v448 = vrot.slane %v443, %v447
    %v450 = vadd.f32 %v437, %v448
    %v451 = vadd.f32 %v440, %v448
    %452 = vst.msk [vmem:[#allocation2] sm:$0xff] %vm164, %v450
    %453 = vst.msk [vmem:[#allocation2 + $0x8] sm:$0xff] %vm164, %v451
    // Predicated region
    $region38: #{tpu_custom_call.1} parent=1 // pred_check
      _
    $region39: #{tpu_custom_call.1} parent=1 // pred_check_branch
      %455 = sbr.rel (0) target = $region41
    $region40: #{tpu_custom_call.1} parent=1 // pred_region
      %s457 = ssub.s32 256, 256
      %458 = vsyncadd [#allocation3], %s457
      %s459 = sshll.u32 [#allocation2], 4
      %s460 = int_to_ptr.vmem [resolvable:$true] %s459
      %465 = dma.vmem_to_hbm [thread:$0]  %s460, 256, %s9, [#allocation3], 128, 128, 8
    $region41: #{tpu_custom_call.1} parent=1 // pred_fallthru
      _
    // Predicated region
    $region42: #{tpu_custom_call.1} parent=1 // pred_check
      _
    $region43: #{tpu_custom_call.1} parent=1 // pred_check_branch
      %467 = sbr.rel (0) target = $region45
    $region44: #{tpu_custom_call.1} parent=1 // pred_region
      %468 = dma.done [#allocation3], 256
    $region45: #{tpu_custom_call.1} parent=1 // pred_fallthru
      _
    %469 = vsyncpa [#allocation3], 1

// kernel: tpu_custom_call.1
$region0: #{tpu_custom_call.1}
  #allocation0 [shape = 'u32[]', space=smem, size = 0x4, offset = 0x4, fixed_abs, tag = 'smem constant byte address 0x4 - core index']
  #allocation1 [shape = 'u32[144,128]{1,0:T(1,128)}', space=vmem, size = 0x12000, scoped, tag = 'internal scratch']
  %s0 = inlined_call_operand.vmem [shape: f32[16,32], index: 0, kind: input, shape index: {}]
  %s1 = inlined_call_operand.vmem [shape: f32[16,8], index: 1, kind: input, shape index: {}]
  %s2 = inlined_call_operand.vmem [shape: bf16[32,128], index: 2, kind: input, shape index: {}]
  %s3 = inlined_call_operand.vmem [shape: bf16[8,288], index: 3, kind: input, shape index: {}]
  %s4 = inlined_call_operand.vmem [shape: f32[1,128], index: 4, kind: input, shape index: {}]
  %s5 = inlined_call_operand.vmem [shape: bf16[128,128], index: 5, kind: input, shape index: {}]
  %s6 = inlined_call_operand.vmem [shape: f32[1,128], index: 6, kind: input, shape index: {}]
  %s7 = inlined_call_operand.vmem [shape: bf16[128,32], index: 7, kind: input, shape index: {}]
  %s8 = inlined_call_operand.vmem [shape: f32[1,32], index: 8, kind: input, shape index: {}]
  %s9 = inlined_call_operand.hbm [shape: f32[16,32], index: 9, kind: output, shape index: {}]
  %s10 = sld [smem:[#allocation0]]
  $region46: #{tpu_custom_call.1} parent=0
    _
  %s12 = ssub.s32 1, %s10
  %s13 = scalar_select 0, %s12, %s10
  $region1: #{tpu_custom_call.1} parent=0
    #allocation2 [shape = 'u8[8192]{0}', space=vmem, size = 0x2000, scoped, tag = 'output window, operand 0, single buffered']
    #allocation3 [shape = 's32[1]{0}', space=sflag, size = 0x4, scoped, tag = 'scoped memory for tpu_custom_call.1']
    %14 = vsyncpa [#allocation3], 0
    // Predicated region
    $region2: #{tpu_custom_call.1} parent=1 // pred_check
      _
    $region3: #{tpu_custom_call.1} parent=1 // pred_check_branch
      %16 = sbr.rel (0) target = $region5
    $region4: #{tpu_custom_call.1} parent=1 // pred_region
      _
    $region5: #{tpu_custom_call.1} parent=1 // pred_fallthru
      _
    // Predicated region
    $region6: #{tpu_custom_call.1} parent=1 // pred_check
      _
    $region7: #{tpu_custom_call.1} parent=1 // pred_check_branch
      %18 = sbr.rel (0) target = $region9
    $region8: #{tpu_custom_call.1} parent=1 // pred_region
      _
    $region9: #{tpu_custom_call.1} parent=1 // pred_fallthru
      _
    // Predicated region
    $region10: #{tpu_custom_call.1} parent=1 // pred_check
      _
    $region11: #{tpu_custom_call.1} parent=1 // pred_check_branch
      %20 = sbr.rel (0) target = $region13
    $region12: #{tpu_custom_call.1} parent=1 // pred_region
      _
    $region13: #{tpu_custom_call.1} parent=1 // pred_fallthru
      _
    // Predicated region
    $region14: #{tpu_custom_call.1} parent=1 // pred_check
      _
    $region15: #{tpu_custom_call.1} parent=1 // pred_check_branch
      %22 = sbr.rel (0) target = $region17
    $region16: #{tpu_custom_call.1} parent=1 // pred_region
      _
    $region17: #{tpu_custom_call.1} parent=1 // pred_fallthru
      _
    // Predicated region
    $region18: #{tpu_custom_call.1} parent=1 // pred_check
      _
    $region19: #{tpu_custom_call.1} parent=1 // pred_check_branch
      %24 = sbr.rel (0) target = $region21
    $region20: #{tpu_custom_call.1} parent=1 // pred_region
      _
    $region21: #{tpu_custom_call.1} parent=1 // pred_fallthru
      _
    // Predicated region
    $region22: #{tpu_custom_call.1} parent=1 // pred_check
      _
    $region23: #{tpu_custom_call.1} parent=1 // pred_check_branch
      %26 = sbr.rel (0) target = $region25
    $region24: #{tpu_custom_call.1} parent=1 // pred_region
      _
    $region25: #{tpu_custom_call.1} parent=1 // pred_fallthru
      _
    // Predicated region
    $region26: #{tpu_custom_call.1} parent=1 // pred_check
      _
    $region27: #{tpu_custom_call.1} parent=1 // pred_check_branch
      %28 = sbr.rel (0) target = $region29
    $region28: #{tpu_custom_call.1} parent=1 // pred_region
      _
    $region29: #{tpu_custom_call.1} parent=1 // pred_fallthru
      _
    // Predicated region
    $region30: #{tpu_custom_call.1} parent=1 // pred_check
      _
    $region31: #{tpu_custom_call.1} parent=1 // pred_check_branch
      %30 = sbr.rel (0) target = $region33
    $region32: #{tpu_custom_call.1} parent=1 // pred_region
      _
    $region33: #{tpu_custom_call.1} parent=1 // pred_fallthru
      _
    // Predicated region
    $region34: #{tpu_custom_call.1} parent=1 // pred_check
      _
    $region35: #{tpu_custom_call.1} parent=1 // pred_check_branch
      %32 = sbr.rel (0) target = $region37
    $region36: #{tpu_custom_call.1} parent=1 // pred_region
      _
    $region37: #{tpu_custom_call.1} parent=1 // pred_fallthru
      _
    %v34 = vld [vmem:[%s0] sm:$0xff]
    %v35 = vld [vmem:[%s0 + $0x8] sm:$0xff]
    %v36 = vpack.c.bf16 %v35, %v34
    %v37 = vld [vmem:[%s1] sm:$0xff]
    %v38 = vld [vmem:[%s1 + $0x8] sm:$0xff]
    %v39 = vpack.c.bf16 %v38, %v37
    %v40 = vld [vmem:[%s3] sm:$0xff]
    %v41 = vld [vmem:[%s3 + $0x8] sm:$0xf]
    %v44 = vunpack.c.l.b16 %v40
    %v45 = vunpack.c.h.b16 %v40
    %v46 = vunpack.c.l.b16 %v41
    %v47 = vpack.c.b16 %v44, %v44
    %v48 = vpack.c.b16 %v45, %v45
    %v49 = vpack.c.b16 %v46, %v46
    %vm50 = vcmask 64512
    %v52 = vsel %vm50, %v39, 0
    %vm54 = vcmask 1043456
    %v56 = vsel %vm54, %v47, 0
    %v59 = vsel %vm54, %v48, 0
    %v62 = vsel %vm54, %v49, 0
    %64 = vmatprep.subr.bf16.mxu0 %v59
    %65 = vmatpush1.bf16.msra.mxu0 %v56
    %66 = vmatprep.subr.bf16.mxu0 0
    %67 = vmatpush1.bf16.msra.mxu0 0
    %68 = vmatprep.subr.bf16.mxu0 0
    %69 = vmatpush1.bf16.msra.mxu0 0
    %70 = vmatprep.subr.bf16.mxu0 0
    %71 = vmatpush1.bf16.msra.mxu0 0
    %72 = vmatprep.subr.bf16.mxu0 0
    %73 = vmatpush1.bf16.msra.mxu0 0
    %74 = vmatprep.subr.bf16.mxu0 0
    %75 = vmatpush1.bf16.msra.mxu0 0
    %76 = vmatprep.subr.bf16.mxu0 0
    %77 = vmatpush1.bf16.msra.mxu0 0
    %78 = vmatprep.subr.bf16.mxu0 0
    %79 = vmatpush1.bf16.msra.mxu0 0
    %80 = vmatprep.subr.bf16.mxu0 0
    %81 = vmatpush1.bf16.msra.mxu0 0
    %82 = vmatprep.subr.bf16.mxu0 0
    %83 = vmatpush1.bf16.msra.mxu0 0
    %84 = vmatprep.subr.bf16.mxu0 0
    %85 = vmatpush1.bf16.msra.mxu0 0
    %86 = vmatprep.subr.bf16.mxu0 0
    %87 = vmatpush1.bf16.msra.mxu0 0
    %88 = vmatprep.subr.bf16.mxu0 0
    %89 = vmatpush1.bf16.msra.mxu0 0
    %90 = vmatprep.subr.bf16.mxu0 0
    %91 = vmatpush1.bf16.msra.mxu0 0
    %92 = vmatprep.subr.bf16.mxu0 0
    %93 = vmatpush1.bf16.msra.mxu0 0
    %94 = vmatprep.subr.bf16.mxu0 0
    %95 = vmatpush1.bf16.msra.mxu0 0
    %96 = vmatprep.mubr.bf16.mxu0 0
    %97 = vmatmul.mubr.bf16.gmra.mrb[0].mxu0 %v52
    %v98 = vpop.f32.mrb[0].mxu0
    %v99 = vadd.f32 0.0, %v98
    %v100 = vpop.f32.mrb[0].mxu0
    %v101 = vadd.f32 0.0, %v100
    %v102 = vpop.f32.mrb[0].mxu0
    %v103 = vadd.f32 0.0, %v102
    %v104 = vpop.f32.mrb[0].mxu0
    %v105 = vadd.f32 0.0, %v104
    %106 = vdwg.mxu0
    %107 = vmatprep.subr.bf16.mxu0 0
    %108 = vmatpush1.bf16.msra.mxu0 %v62
    %109 = vmatprep.subr.bf16.mxu0 0
    %110 = vmatpush1.bf16.msra.mxu0 0
    %111 = vmatprep.subr.bf16.mxu0 0
    %112 = vmatpush1.bf16.msra.mxu0 0
    %113 = vmatprep.subr.bf16.mxu0 0
    %114 = vmatpush1.bf16.msra.mxu0 0
    %115 = vmatprep.subr.bf16.mxu0 0
    %116 = vmatpush1.bf16.msra.mxu0 0
    %117 = vmatprep.subr.bf16.mxu0 0
    %118 = vmatpush1.bf16.msra.mxu0 0
    %119 = vmatprep.subr.bf16.mxu0 0
    %120 = vmatpush1.bf16.msra.mxu0 0
    %121 = vmatprep.subr.bf16.mxu0 0
    %122 = vmatpush1.bf16.msra.mxu0 0
    %123 = vmatprep.subr.bf16.mxu0 0
    %124 = vmatpush1.bf16.msra.mxu0 0
    %125 = vmatprep.subr.bf16.mxu0 0
    %126 = vmatpush1.bf16.msra.mxu0 0
    %127 = vmatprep.subr.bf16.mxu0 0
    %128 = vmatpush1.bf16.msra.mxu0 0
    %129 = vmatprep.subr.bf16.mxu0 0
    %130 = vmatpush1.bf16.msra.mxu0 0
    %131 = vmatprep.subr.bf16.mxu0 0
    %132 = vmatpush1.bf16.msra.mxu0 0
    %133 = vmatprep.subr.bf16.mxu0 0
    %134 = vmatpush1.bf16.msra.mxu0 0
    %135 = vmatprep.subr.bf16.mxu0 0
    %136 = vmatpush1.bf16.msra.mxu0 0
    %137 = vmatprep.subr.bf16.mxu0 0
    %138 = vmatpush1.bf16.msra.mxu0 0
    %139 = vmatprep.mubr.bf16.mxu0 0
    %140 = vmatmul.mubr.bf16.gmra.mrb[0].mxu0 %v52
    %v141 = vpop.f32.mrb[0].mxu0
    %v142 = vadd.f32 0.0, %v141
    %v143 = vpop.f32.mrb[0].mxu0
    %v144 = vpop.f32.mrb[0].mxu0
    %v145 = vadd.f32 0.0, %v144
    %v146 = vpop.f32.mrb[0].mxu0
    %147 = vdwg.mxu0
    %v148 = vld [vmem:[%s2] sm:$0xf]
    %v149 = vld [vmem:[%s2 + $0x4] sm:$0xf]
    %v150 = vld [vmem:[%s2 + $0x8] sm:$0xf]
    %v151 = vld [vmem:[%s2 + $0xc] sm:$0xf]
    %v156 = vunpack.c.l.b16 %v148
    %v157 = vunpack.c.l.b16 %v149
    %v158 = vunpack.c.l.b16 %v150
    %v159 = vunpack.c.l.b16 %v151
    %v160 = vpack.c.b16 %v157, %v156
    %v161 = vpack.c.b16 %v159, %v158
    %vm164 = vcmask 261120
    %v166 = vsel %vm164, %v36, 0
    %168 = vmatprep.subr.bf16.mxu0 0
    %169 = vmatpush1.bf16.msra.mxu0 %v160
    %170 = vmatprep.subr.bf16.mxu0 0
    %171 = vmatpush1.bf16.msra.mxu0 %v161
    %172 = vmatprep.subr.bf16.mxu0 0
    %173 = vmatpush1.bf16.msra.mxu0 0
    %174 = vmatprep.subr.bf16.mxu0 0
    %175 = vmatpush1.bf16.msra.mxu0 0
    %176 = vmatprep.subr.bf16.mxu0 0
    %177 = vmatpush1.bf16.msra.mxu0 0
    %178 = vmatprep.subr.bf16.mxu0 0
    %179 = vmatpush1.bf16.msra.mxu0 0
    %180 = vmatprep.subr.bf16.mxu0 0
    %181 = vmatpush1.bf16.msra.mxu0 0
    %182 = vmatprep.subr.bf16.mxu0 0
    %183 = vmatpush1.bf16.msra.mxu0 0
    %184 = vmatprep.subr.bf16.mxu0 0
    %185 = vmatpush1.bf16.msra.mxu0 0
    %186 = vmatprep.subr.bf16.mxu0 0
    %187 = vmatpush1.bf16.msra.mxu0 0
    %188 = vmatprep.subr.bf16.mxu0 0
    %189 = vmatpush1.bf16.msra.mxu0 0
    %190 = vmatprep.subr.bf16.mxu0 0
    %191 = vmatpush1.bf16.msra.mxu0 0
    %192 = vmatprep.subr.bf16.mxu0 0
    %193 = vmatpush1.bf16.msra.mxu0 0
    %194 = vmatprep.subr.bf16.mxu0 0
    %195 = vmatpush1.bf16.msra.mxu0 0
    %196 = vmatprep.subr.bf16.mxu0 0
    %197 = vmatpush1.bf16.msra.mxu0 0
    %198 = vmatprep.subr.bf16.mxu0 0
    %199 = vmatpush1.bf16.msra.mxu0 0
    %200 = vmatprep.mubr.bf16.mxu0 0
    %201 = vmatmul.mubr.bf16.gmra.mrb[0].mxu0 %v166
    %v202 = vpop.f32.mrb[0].mxu0
    %v203 = vadd.f32 %v99, %v202
    %v204 = vpop.f32.mrb[0].mxu0
    %v205 = vpop.f32.mrb[0].mxu0
    %v206 = vadd.f32 %v103, %v205
    %v207 = vpop.f32.mrb[0].mxu0
    %208 = vdwg.mxu0
    %v209 = vld [vmem:[%s4] sm:$0x1]
    %v211 = vlaneseq
    %v212 = vshrl.u32 %v211, 7
    %v213 = vsub.s32 0, %v212
    %v214 = vrot.slane %v209, %v213
    %v216 = vadd.f32 %v203, %v214
    %v217 = vadd.f32 %v206, %v214
    %v218 = vmax.f32 %v216, 0.0
    %v219 = vmax.f32 %v217, 0.0
    %v220 = vpack.c.bf16 %v219, %v218
    %v221 = vld [vmem:[%s5] sm:$0xf]
    %v222 = vld [vmem:[%s5 + $0x4] sm:$0xf]
    %v223 = vld [vmem:[%s5 + $0x8] sm:$0xf]
    %v224 = vld [vmem:[%s5 + $0xc] sm:$0xf]
    %v225 = vld [vmem:[%s5 + $0x10] sm:$0xf]
    %v226 = vld [vmem:[%s5 + $0x14] sm:$0xf]
    %v227 = vld [vmem:[%s5 + $0x18] sm:$0xf]
    %v228 = vld [vmem:[%s5 + $0x1c] sm:$0xf]
    %v229 = vld [vmem:[%s5 + $0x20] sm:$0xf]
    %v230 = vld [vmem:[%s5 + $0x24] sm:$0xf]
    %v231 = vld [vmem:[%s5 + $0x28] sm:$0xf]
    %v232 = vld [vmem:[%s5 + $0x2c] sm:$0xf]
    %v233 = vld [vmem:[%s5 + $0x30] sm:$0xf]
    %v234 = vld [vmem:[%s5 + $0x34] sm:$0xf]
    %v235 = vld [vmem:[%s5 + $0x38] sm:$0xf]
    %v236 = vld [vmem:[%s5 + $0x3c] sm:$0xf]
    %v253 = vunpack.c.l.b16 %v221
    %v254 = vunpack.c.l.b16 %v222
    %v255 = vunpack.c.l.b16 %v223
    %v256 = vunpack.c.l.b16 %v224
    %v257 = vunpack.c.l.b16 %v225
    %v258 = vunpack.c.l.b16 %v226
    %v259 = vunpack.c.l.b16 %v227
    %v260 = vunpack.c.l.b16 %v228
    %v261 = vunpack.c.l.b16 %v229
    %v262 = vunpack.c.l.b16 %v230
    %v263 = vunpack.c.l.b16 %v231
    %v264 = vunpack.c.l.b16 %v232
    %v265 = vunpack.c.l.b16 %v233
    %v266 = vunpack.c.l.b16 %v234
    %v267 = vunpack.c.l.b16 %v235
    %v268 = vunpack.c.l.b16 %v236
    %v269 = vpack.c.b16 %v254, %v253
    %v270 = vpack.c.b16 %v256, %v255
    %v271 = vpack.c.b16 %v258, %v257
    %v272 = vpack.c.b16 %v260, %v259
    %v273 = vpack.c.b16 %v262, %v261
    %v274 = vpack.c.b16 %v264, %v263
    %v275 = vpack.c.b16 %v266, %v265
    %v276 = vpack.c.b16 %v268, %v267
    %285 = vmatprep.subr.bf16.mxu0 0
    %286 = vmatpush1.bf16.msra.mxu0 %v269
    %287 = vmatprep.subr.bf16.mxu0 0
    %288 = vmatpush1.bf16.msra.mxu0 %v270
    %289 = vmatprep.subr.bf16.mxu0 0
    %290 = vmatpush1.bf16.msra.mxu0 %v271
    %291 = vmatprep.subr.bf16.mxu0 0
    %292 = vmatpush1.bf16.msra.mxu0 %v272
    %293 = vmatprep.subr.bf16.mxu0 0
    %294 = vmatpush1.bf16.msra.mxu0 %v273
    %295 = vmatprep.subr.bf16.mxu0 0
    %296 = vmatpush1.bf16.msra.mxu0 %v274
    %297 = vmatprep.subr.bf16.mxu0 0
    %298 = vmatpush1.bf16.msra.mxu0 %v275
    %299 = vmatprep.subr.bf16.mxu0 0
    %300 = vmatpush1.bf16.msra.mxu0 %v276
    %301 = vmatprep.subr.bf16.mxu0 0
    %302 = vmatpush1.bf16.msra.mxu0 0
    %303 = vmatprep.subr.bf16.mxu0 0
    %304 = vmatpush1.bf16.msra.mxu0 0
    %305 = vmatprep.subr.bf16.mxu0 0
    %306 = vmatpush1.bf16.msra.mxu0 0
    %307 = vmatprep.subr.bf16.mxu0 0
    %308 = vmatpush1.bf16.msra.mxu0 0
    %309 = vmatprep.subr.bf16.mxu0 0
    %310 = vmatpush1.bf16.msra.mxu0 0
    %311 = vmatprep.subr.bf16.mxu0 0
    %312 = vmatpush1.bf16.msra.mxu0 0
    %313 = vmatprep.subr.bf16.mxu0 0
    %314 = vmatpush1.bf16.msra.mxu0 0
    %315 = vmatprep.subr.bf16.mxu0 0
    %316 = vmatpush1.bf16.msra.mxu0 0
    %317 = vmatprep.mubr.bf16.mxu0 0
    %318 = vmatmul.mubr.bf16.gmra.mrb[0].mxu0 %v220
    %v319 = vpop.f32.mrb[0].mxu0
    %v320 = vadd.f32 %v101, %v319
    %v321 = vpop.f32.mrb[0].mxu0
    %v322 = vpop.f32.mrb[0].mxu0
    %v323 = vadd.f32 %v105, %v322
    %v324 = vpop.f32.mrb[0].mxu0
    %325 = vdwg.mxu0
    %v326 = vld [vmem:[%s6] sm:$0x1]
    %v328 = vlaneseq
    %v329 = vshrl.u32 %v328, 7
    %v330 = vsub.s32 0, %v329
    %v331 = vrot.slane %v326, %v330
    %v333 = vadd.f32 %v320, %v331
    %v334 = vadd.f32 %v323, %v331
    %v335 = vmax.f32 %v333, 0.0
    %v336 = vmax.f32 %v334, 0.0
    %v337 = vpack.c.bf16 %v336, %v335
    %v338 = vld [vmem:[%s7] sm:$0xf]
    %v339 = vld [vmem:[%s7 + $0x4] sm:$0xf]
    %v340 = vld [vmem:[%s7 + $0x8] sm:$0xf]
    %v341 = vld [vmem:[%s7 + $0xc] sm:$0xf]
    %v342 = vld [vmem:[%s7 + $0x10] sm:$0xf]
    %v343 = vld [vmem:[%s7 + $0x14] sm:$0xf]
    %v344 = vld [vmem:[%s7 + $0x18] sm:$0xf]
    %v345 = vld [vmem:[%s7 + $0x1c] sm:$0xf]
    %v346 = vld [vmem:[%s7 + $0x20] sm:$0xf]
    %v347 = vld [vmem:[%s7 + $0x24] sm:$0xf]
    %v348 = vld [vmem:[%s7 + $0x28] sm:$0xf]
    %v349 = vld [vmem:[%s7 + $0x2c] sm:$0xf]
    %v350 = vld [vmem:[%s7 + $0x30] sm:$0xf]
    %v351 = vld [vmem:[%s7 + $0x34] sm:$0xf]
    %v352 = vld [vmem:[%s7 + $0x38] sm:$0xf]
    %v353 = vld [vmem:[%s7 + $0x3c] sm:$0xf]
    %v370 = vunpack.c.l.b16 %v338
    %v371 = vunpack.c.l.b16 %v339
    %v372 = vunpack.c.l.b16 %v340
    %v373 = vunpack.c.l.b16 %v341
    %v374 = vunpack.c.l.b16 %v342
    %v375 = vunpack.c.l.b16 %v343
    %v376 = vunpack.c.l.b16 %v344
    %v377 = vunpack.c.l.b16 %v345
    %v378 = vunpack.c.l.b16 %v346
    %v379 = vunpack.c.l.b16 %v347
    %v380 = vunpack.c.l.b16 %v348
    %v381 = vunpack.c.l.b16 %v349
    %v382 = vunpack.c.l.b16 %v350
    %v383 = vunpack.c.l.b16 %v351
    %v384 = vunpack.c.l.b16 %v352
    %v385 = vunpack.c.l.b16 %v353
    %v386 = vpack.c.b16 %v371, %v370
    %v387 = vpack.c.b16 %v373, %v372
    %v388 = vpack.c.b16 %v375, %v374
    %v389 = vpack.c.b16 %v377, %v376
    %v390 = vpack.c.b16 %v379, %v378
    %v391 = vpack.c.b16 %v381, %v380
    %v392 = vpack.c.b16 %v383, %v382
    %v393 = vpack.c.b16 %v385, %v384
    %402 = vmatprep.subr.bf16.mxu0 0
    %403 = vmatpush1.bf16.msra.mxu0 %v386
    %404 = vmatprep.subr.bf16.mxu0 0
    %405 = vmatpush1.bf16.msra.mxu0 %v387
    %406 = vmatprep.subr.bf16.mxu0 0
    %407 = vmatpush1.bf16.msra.mxu0 %v388
    %408 = vmatprep.subr.bf16.mxu0 0
    %409 = vmatpush1.bf16.msra.mxu0 %v389
    %410 = vmatprep.subr.bf16.mxu0 0
    %411 = vmatpush1.bf16.msra.mxu0 %v390
    %412 = vmatprep.subr.bf16.mxu0 0
    %413 = vmatpush1.bf16.msra.mxu0 %v391
    %414 = vmatprep.subr.bf16.mxu0 0
    %415 = vmatpush1.bf16.msra.mxu0 %v392
    %416 = vmatprep.subr.bf16.mxu0 0
    %417 = vmatpush1.bf16.msra.mxu0 %v393
    %418 = vmatprep.subr.bf16.mxu0 0
    %419 = vmatpush1.bf16.msra.mxu0 0
    %420 = vmatprep.subr.bf16.mxu0 0
    %421 = vmatpush1.bf16.msra.mxu0 0
    %422 = vmatprep.subr.bf16.mxu0 0
    %423 = vmatpush1.bf16.msra.mxu0 0
    %424 = vmatprep.subr.bf16.mxu0 0
    %425 = vmatpush1.bf16.msra.mxu0 0
    %426 = vmatprep.subr.bf16.mxu0 0
    %427 = vmatpush1.bf16.msra.mxu0 0
    %428 = vmatprep.subr.bf16.mxu0 0
    %429 = vmatpush1.bf16.msra.mxu0 0
    %430 = vmatprep.subr.bf16.mxu0 0
    %431 = vmatpush1.bf16.msra.mxu0 0
    %432 = vmatprep.subr.bf16.mxu0 0
    %433 = vmatpush1.bf16.msra.mxu0 0
    %434 = vmatprep.mubr.bf16.mxu0 0
    %435 = vmatmul.mubr.bf16.gmra.mrb[0].mxu0 %v337
    %v436 = vpop.f32.mrb[0].mxu0
    %v437 = vadd.f32 %v142, %v436
    %v438 = vpop.f32.mrb[0].mxu0
    %v439 = vpop.f32.mrb[0].mxu0
    %v440 = vadd.f32 %v145, %v439
    %v441 = vpop.f32.mrb[0].mxu0
    %442 = vdwg.mxu0
    %v443 = vld [vmem:[%s8] sm:$0x1]
    %v445 = vlaneseq
    %v446 = vshrl.u32 %v445, 7
    %v447 = vsub.s32 0, %v446
    %v448 = vrot.slane %v443, %v447
    %v450 = vadd.f32 %v437, %v448
    %v451 = vadd.f32 %v440, %v448
    %452 = vst.msk [vmem:[#allocation2] sm:$0xff] %vm164, %v450
    %453 = vst.msk [vmem:[#allocation2 + $0x8] sm:$0xff] %vm164, %v451
    // Predicated region
    $region38: #{tpu_custom_call.1} parent=1 // pred_check
      _
    $region39: #{tpu_custom_call.1} parent=1 // pred_check_branch
      %455 = sbr.rel (0) target = $region41
    $region40: #{tpu_custom_call.1} parent=1 // pred_region
      %s457 = ssub.s32 256, 256
      %458 = vsyncadd [#allocation3], %s457
      %s459 = sshll.u32 [#allocation2], 4
      %s460 = int_to_ptr.vmem [resolvable:$true] %s459
      %465 = dma.vmem_to_hbm [thread:$0]  %s460, 256, %s9, [#allocation3], 128, 128, 8
    $region41: #{tpu_custom_call.1} parent=1 // pred_fallthru
      _
    // Predicated region
    $region42: #{tpu_custom_call.1} parent=1 // pred_check
      _
    $region43: #{tpu_custom_call.1} parent=1 // pred_check_branch
      %467 = sbr.rel (0) target = $region45
    $region44: #{tpu_custom_call.1} parent=1 // pred_region
      %468 = dma.done [#allocation3], 256
    $region45: #{tpu_custom_call.1} parent=1 // pred_fallthru
      _
    %469 = vsyncpa [#allocation3], 1

</llo_original>
